<compile_context>
chip_gen: v7x
topology: tpu7x:2x2x1
jax: 0.10.0
libtpu: 0.0.40
codegen_flags: <defaults>
</compile_context>

<pallas_src>
import functools

import jax
import jax.numpy as jnp
import numpy as np
from jax.experimental import pallas as pl
from jax.experimental.pallas import tpu as pltpu


# ---------------------------------------------------------------------------
# Fused single-pass kernel: whole (bt, C, H*W) slab resident in VMEM.
# ---------------------------------------------------------------------------
def _channel_gate_kernel(x_ref, w1_ref, b1_ref, w2_ref, b2_ref, o_ref, *, hw):
    bt = x_ref.shape[0]

    # ---- global avg / max pooling: single pass over x, both reductions ------
    xf = x_ref[...].astype(jnp.float32)                  # (bt, C, HW)
    sum_c = jnp.sum(xf, axis=-1)                         # (bt, C) lane reduce (XLU)
    max_c = jnp.max(xf, axis=-1)                         # (bt, C)
    avg_c = sum_c * (1.0 / hw)

    # ---- shared MLP on the stacked (2*bt, C) pooled matrix -------------------
    pooled = jnp.concatenate([avg_c, max_c], axis=0)     # (2*bt, C)
    h = jnp.dot(pooled, w1_ref[...],
                preferred_element_type=jnp.float32) + b1_ref[...]
    h = jnp.maximum(h, 0.0)
    att = jnp.dot(h, w2_ref[...],
                  preferred_element_type=jnp.float32) + b2_ref[...]
    scale = jax.nn.sigmoid(att[:bt] + att[bt:])          # (bt, C) f32

    # ---- per-channel gate: broadcast scale over the lane (spatial) axis ------
    # bf16 inputs: multiply in bf16 (v6e/v7x VPU is bf16-native); else f32.
    gate_dtype = jnp.bfloat16 if x_ref.dtype == jnp.bfloat16 else jnp.float32
    s = scale.astype(gate_dtype)[:, :, None]             # (bt, C, 1)
    o_ref[...] = (x_ref[...].astype(gate_dtype) * s).astype(o_ref.dtype)


# ---------------------------------------------------------------------------
# Spatial-tiled fallback kernels (images too large for a single VMEM slab).
# ---------------------------------------------------------------------------
def _pool_kernel(x_ref, sum_ref, max_ref, *, hw, masked):
    k = pl.program_id(1)
    ts = x_ref.shape[-1]
    xf = x_ref[...].astype(jnp.float32)                  # (1, C, ts)
    if masked:  # last spatial tile may be partial -> mask padded lanes
        lane = jax.lax.broadcasted_iota(jnp.int32, xf.shape, 2)
        valid = (k * ts + lane) < hw
        xs = jnp.where(valid, xf, 0.0)
        xm = jnp.where(valid, xf, -jnp.inf)
    else:
        xs, xm = xf, xf
    psum = jnp.sum(xs, axis=-1, keepdims=True)           # (1, C, 1)
    pmax = jnp.max(xm, axis=-1, keepdims=True)           # (1, C, 1)

    @pl.when(k == 0)
    def _():
        sum_ref[...] = psum
        max_ref[...] = pmax

    @pl.when(k != 0)
    def _():
        sum_ref[...] = sum_ref[...] + psum
        max_ref[...] = jnp.maximum(max_ref[...], pmax)


def _gate_kernel(scale_ref, x_ref, o_ref):
    gate_dtype = jnp.bfloat16 if x_ref.dtype == jnp.bfloat16 else jnp.float32
    s = scale_ref[...].astype(gate_dtype)                # (1, C, 1)
    o_ref[...] = (x_ref[...].astype(gate_dtype) * s).astype(o_ref.dtype)


# ---------------------------------------------------------------------------
# Block-size / VMEM budgeting helpers.
# ---------------------------------------------------------------------------
def _vmem_limit_bytes():
    """Generation-aware scoped-VMEM request."""
    try:
        kind = jax.devices()[0].device_kind.lower()
    except Exception:
        kind = ""
    if "v5" in kind and ("lite" in kind or "v5e" in kind):
        return 12 << 20      # v5e: stay near its 16 MiB default scoped VMEM
    return 24 << 20          # v6e (32 MiB default) / v7x (64 MiB physical)


def _pick_block_b(B, bytes_per_image, budget_bytes):
    """Largest divisor bt of B whose double-buffered in+out block fits the
    budget, capped so the grid has >=2 steps (keeps both v7x TCs busy).
    Returns 0 if even a single image does not fit (caller uses fallback)."""
    if 4 * bytes_per_image > budget_bytes:
        return 0
    cap = B if B == 1 else B // 2
    best = 1
    for bt in range(1, cap + 1):
        if B % bt == 0 and 4 * bt * bytes_per_image <= budget_bytes:
            best = bt
    return best


# ---------------------------------------------------------------------------
# Wrappers.
# ---------------------------------------------------------------------------
def _channel_gate_fused(x, w1, b1, w2, b2, *, bt, vmem_limit):
    B, C, HW = x.shape
    Cr = w1.shape[1]
    itemsize = x.dtype.itemsize
    cost = pl.CostEstimate(
        flops=int(3 * B * C * HW + 8 * B * C * Cr),
        transcendentals=int(B * C),
        bytes_accessed=int(2 * B * C * HW * itemsize),
    )
    kernel = functools.partial(_channel_gate_kernel, hw=HW)
    return pl.pallas_call(
        kernel,
        out_shape=jax.ShapeDtypeStruct((B, C, HW), x.dtype),
        grid=(B // bt,),
        in_specs=[
            pl.BlockSpec((bt, C, HW), lambda b: (b, 0, 0)),   # x (layout-native)
            pl.BlockSpec(w1.shape, lambda b: (0, 0)),         # W1 (C, C/r)
            pl.BlockSpec(b1.shape, lambda b: (0, 0)),         # b1 (1, C/r)
            pl.BlockSpec(w2.shape, lambda b: (0, 0)),         # W2 (C/r, C)
            pl.BlockSpec(b2.shape, lambda b: (0, 0)),         # b2 (1, C)
        ],
        out_specs=pl.BlockSpec((bt, C, HW), lambda b: (b, 0, 0)),
        compiler_params=pltpu.CompilerParams(
            dimension_semantics=("parallel",),
            vmem_limit_bytes=vmem_limit),
        cost_estimate=cost,
    )(x, w1, b1, w2, b2)


def _channel_gate_spatial_tiled(x, w1, b1, w2, b2, *, spatial_tile, budget,
                                vmem_limit):
    """Two-pass fallback: pool-accumulate over spatial tiles, tiny MLP in plain
    JAX, then a gating pass over the same tiles.  Reads x from HBM twice, but
    works for images whose (C, H*W) slab exceeds the VMEM budget."""
    B, C, HW = x.shape
    itemsize = x.dtype.itemsize

    if spatial_tile is None:
        ts = (budget // (4 * C * itemsize)) // 128 * 128
    else:
        ts = (spatial_tile // 128) * 128
    ts = min(HW, max(128, ts))            # multiple of 128, or full extent
    masked = (HW % ts) != 0
    grid = (B, pl.cdiv(HW, ts))

    sum_c, max_c = pl.pallas_call(
        functools.partial(_pool_kernel, hw=HW, masked=masked),
        out_shape=(jax.ShapeDtypeStruct((B, C, 1), jnp.float32),
                   jax.ShapeDtypeStruct((B, C, 1), jnp.float32)),
        grid=grid,
        in_specs=[pl.BlockSpec((1, C, ts), lambda b, k: (b, 0, k))],
        out_specs=(pl.BlockSpec((1, C, 1), lambda b, k: (b, 0, 0)),
                   pl.BlockSpec((1, C, 1), lambda b, k: (b, 0, 0))),
        compiler_params=pltpu.CompilerParams(
            dimension_semantics=("parallel", "arbitrary"),
            vmem_limit_bytes=vmem_limit),
    )(x)

    # Tiny shared MLP + sigmoid on (2B, C) matrices -- negligible work.
    avg = sum_c[:, :, 0] * (1.0 / HW)
    mx = max_c[:, :, 0]
    pooled = jnp.concatenate([avg, mx], axis=0)
    h = jnp.maximum(pooled @ w1 + b1, 0.0)
    att = h @ w2 + b2
    scale = jax.nn.sigmoid(att[:B] + att[B:])[:, :, None]       # (B, C, 1) f32

    return pl.pallas_call(
        _gate_kernel,
        out_shape=jax.ShapeDtypeStruct((B, C, HW), x.dtype),
        grid=grid,
        in_specs=[pl.BlockSpec((1, C, 1), lambda b, k: (b, 0, 0)),
                  pl.BlockSpec((1, C, ts), lambda b, k: (b, 0, k))],
        out_specs=pl.BlockSpec((1, C, ts), lambda b, k: (b, 0, k)),
        compiler_params=pltpu.CompilerParams(
            dimension_semantics=("parallel", "parallel"),
            vmem_limit_bytes=vmem_limit),
    )(scale, x)


def channel_gate_pallas(x_nchw, w1, b1, w2, b2, *, spatial_tile=None):
    """ChannelGate forward.  x_nchw: (B, C, H, W).  Weights are pre-transposed
    Linear params: w1 (C, C/r), b1 (1, C/r), w2 (C/r, C), b2 (1, C)."""
    B, C, H, W = x_nchw.shape
    HW = H * W
    x = x_nchw.reshape(B, C, HW)          # free reshape; no layout transpose

    vmem_limit = _vmem_limit_bytes()
    budget = (vmem_limit * 3) // 4        # headroom for weights/compiler scratch
    bytes_per_image = C * HW * x.dtype.itemsize

    bt = _pick_block_b(B, bytes_per_image, budget)
    if spatial_tile is None and bt > 0:
        out = _channel_gate_fused(x, w1, b1, w2, b2, bt=bt,
                                  vmem_limit=vmem_limit)
    else:
        out = _channel_gate_spatial_tiled(x, w1, b1, w2, b2,
                                          spatial_tile=spatial_tile,
                                          budget=budget,
                                          vmem_limit=vmem_limit)
    return out.reshape(B, C, H, W)


def channel_gate_reference(x, w1, b1, w2, b2):
    """Pure-JAX NCHW reference (matches the PyTorch module)."""
    avg = x.mean(axis=(2, 3))
    mx = x.max(axis=(2, 3))

    def mlp(p):
        return jnp.maximum(p @ w1 + b1, 0.0) @ w2 + b2

    scale = jax.nn.sigmoid(mlp(avg) + mlp(mx))
    return x * scale[:, :, None, None]


if __name__ == "__main__":
    reduction_ratio = 16
    key = jax.random.PRNGKey(0)

    def make_params(C, k):
        Cr = max(1, C // reduction_ratio)
        k1, k2, k3, k4 = jax.random.split(k, 4)
        s1 = 1.0 / np.sqrt(C)
        w1 = jax.random.uniform(k1, (C, Cr), jnp.float32, -s1, s1)
        b1 = jax.random.uniform(k2, (1, Cr), jnp.float32, -s1, s1)
        s2 = 1.0 / np.sqrt(Cr)
        w2 = jax.random.uniform(k3, (Cr, C), jnp.float32, -s2, s2)
        b2 = jax.random.uniform(k4, (1, C), jnp.float32, -s2, s2)
        return w1, b1, w2, b2

    # ---- main fused path -----------------------------------------------------
    B, C, H, W = 8, 32, 16, 16
    kp, kx, key = jax.random.split(key, 3)
    w1, b1, w2, b2 = make_params(C, kp)
    x = jax.random.normal(kx, (B, C, H, W), jnp.float32)

    out = jax.block_until_ready(channel_gate_pallas(x, w1, b1, w2, b2))
    ref = channel_gate_reference(x, w1, b1, w2, b2)
    np.testing.assert_allclose(np.asarray(out), np.asarray(ref),
                               rtol=1e-5, atol=1e-5)

    # ---- spatial-tiled fallback path (forced; includes a masked partial tile) -
    B2, C2, H2, W2 = 4, 32, 12, 12        # H*W = 144 -> one 128 tile + masked tail
    kp2, kx2 = jax.random.split(key, 2)
    w1b, b1b, w2b, b2b = make_params(C2, kp2)
    x2 = jax.random.normal(kx2, (B2, C2, H2, W2), jnp.float32)

    out2 = jax.block_until_ready(
        channel_gate_pallas(x2, w1b, b1b, w2b, b2b, spatial_tile=128))
    ref2 = channel_gate_reference(x2, w1b, b1b, w2b, b2b)
    np.testing.assert_allclose(np.asarray(out2), np.asarray(ref2),
                               rtol=1e-5, atol=1e-5)

    print("KERNEL_OK")
</pallas_src>

<mosaic_0001>
module attributes {stable_mosaic.version = 11 : i64} {
  func.func @_channel_gate_kernel(%arg0: i32, %arg1: memref<4x32x256xf32, #tpu.memory_space<vmem>>, %arg2: memref<32x2xf32, #tpu.memory_space<vmem>>, %arg3: memref<1x2xf32, #tpu.memory_space<vmem>>, %arg4: memref<2x32xf32, #tpu.memory_space<vmem>>, %arg5: memref<1x32xf32, #tpu.memory_space<vmem>>, %arg6: memref<4x32x256xf32, #tpu.memory_space<vmem>>) attributes {dimension_semantics = [#tpu.dimension_semantics<parallel>], iteration_bounds = array<i64: 2>, scalar_prefetch = 0 : i64, scratch_operands = 0 : i64, tpu.core_type = #tpu.core_type<tc>, window_params = [{transform_indices = @transform_0, window_bounds = array<i64: 4, 32, 256>}, {pipeline_mode = #tpu.pipeline_mode<synchronous>, transform_indices = @transform_1, window_bounds = array<i64: 32, 2>}, {pipeline_mode = #tpu.pipeline_mode<synchronous>, transform_indices = @transform_2, window_bounds = array<i64: 1, 2>}, {pipeline_mode = #tpu.pipeline_mode<synchronous>, transform_indices = @transform_3, window_bounds = array<i64: 2, 32>}, {pipeline_mode = #tpu.pipeline_mode<synchronous>, transform_indices = @transform_4, window_bounds = array<i64: 1, 32>}, {transform_indices = @transform_5, window_bounds = array<i64: 4, 32, 256>}]} {
    %c0 = arith.constant 0 : index
    %c0_0 = arith.constant 0 : index
    %c0_1 = arith.constant 0 : index
    %0 = vector.load %arg1[%c0, %c0_0, %c0_1] : memref<4x32x256xf32, #tpu.memory_space<vmem>>, vector<4x32x256xf32>
    %cst = arith.constant dense<0.000000e+00> : vector<4x32xf32>
    %1 = vector.multi_reduction <add>, %0, %cst [2] : vector<4x32x256xf32> to vector<4x32xf32>
    %cst_2 = arith.constant dense<0xFF800000> : vector<4x32xf32>
    %2 = vector.multi_reduction <maximumf>, %0, %cst_2 [2] : vector<4x32x256xf32> to vector<4x32xf32>
    %cst_3 = arith.constant 3.906250e-03 : f32
    %3 = vector.broadcast %cst_3 : f32 to vector<4x32xf32>
    %4 = arith.mulf %1, %3 : vector<4x32xf32>
    %5 = tpu.concatenate %4, %2 in 0 : vector<4x32xf32>, vector<4x32xf32> -> vector<8x32xf32>
    %c0_4 = arith.constant 0 : index
    %c0_5 = arith.constant 0 : index
    %6 = vector.load %arg2[%c0_4, %c0_5] : memref<32x2xf32, #tpu.memory_space<vmem>>, vector<32x2xf32>
    %cst_6 = arith.constant dense<0.000000e+00> : vector<8x2xf32>
    %7 = tpu.matmul %5, %6, %cst_6 {dimension_numbers = #tpu.dot_dimension_numbers<[1], [0], [0], [1], [0, 0, 1, 1], [], []>} : vector<8x32xf32>, vector<32x2xf32>, vector<8x2xf32> -> vector<8x2xf32>
    %c0_7 = arith.constant 0 : index
    %c0_8 = arith.constant 0 : index
    %8 = vector.load %arg3[%c0_7, %c0_8] : memref<1x2xf32, #tpu.memory_space<vmem>>, vector<1x2xf32>
    %9 = vector.broadcast %8 : vector<1x2xf32> to vector<8x2xf32>
    %10 = arith.addf %7, %9 : vector<8x2xf32>
    %cst_9 = arith.constant 0.000000e+00 : f32
    %11 = vector.broadcast %cst_9 : f32 to vector<8x2xf32>
    %12 = arith.maximumf %10, %11 : vector<8x2xf32>
    %c0_10 = arith.constant 0 : index
    %c0_11 = arith.constant 0 : index
    %13 = vector.load %arg4[%c0_10, %c0_11] : memref<2x32xf32, #tpu.memory_space<vmem>>, vector<2x32xf32>
    %cst_12 = arith.constant dense<0.000000e+00> : vector<8x32xf32>
    %14 = tpu.matmul %12, %13, %cst_12 {dimension_numbers = #tpu.dot_dimension_numbers<[1], [0], [0], [1], [0, 0, 1, 1], [], []>} : vector<8x2xf32>, vector<2x32xf32>, vector<8x32xf32> -> vector<8x32xf32>
    %c0_13 = arith.constant 0 : index
    %c0_14 = arith.constant 0 : index
    %15 = vector.load %arg5[%c0_13, %c0_14] : memref<1x32xf32, #tpu.memory_space<vmem>>, vector<1x32xf32>
    %16 = vector.broadcast %15 : vector<1x32xf32> to vector<8x32xf32>
    %17 = arith.addf %14, %16 : vector<8x32xf32>
    %18 = vector.extract_strided_slice %17 {offsets = [0, 0], sizes = [4, 32], strides = [1, 1]} : vector<8x32xf32> to vector<4x32xf32>
    %19 = vector.extract_strided_slice %17 {offsets = [4, 0], sizes = [4, 32], strides = [1, 1]} : vector<8x32xf32> to vector<4x32xf32>
    %20 = arith.addf %18, %19 : vector<4x32xf32>
    %21 = arith.negf %20 : vector<4x32xf32>
    %22 = math.exp %21 : vector<4x32xf32>
    %cst_15 = arith.constant 1.000000e+00 : f32
    %23 = vector.broadcast %cst_15 : f32 to vector<4x32xf32>
    %24 = arith.addf %23, %22 : vector<4x32xf32>
    %25 = arith.divf %23, %24 : vector<4x32xf32>
    %26 = vector.shape_cast %25 : vector<4x32xf32> to vector<4x32x1xf32>
    %c0_16 = arith.constant 0 : index
    %c0_17 = arith.constant 0 : index
    %c0_18 = arith.constant 0 : index
    %27 = vector.load %arg1[%c0_16, %c0_17, %c0_18] : memref<4x32x256xf32, #tpu.memory_space<vmem>>, vector<4x32x256xf32>
    %28 = vector.broadcast %26 : vector<4x32x1xf32> to vector<4x32x256xf32>
    %29 = arith.mulf %27, %28 : vector<4x32x256xf32>
    %c0_19 = arith.constant 0 : index
    %c0_20 = arith.constant 0 : index
    %c0_21 = arith.constant 0 : index
    %30 = vector.load %arg6[%c0_19, %c0_20, %c0_21] : memref<4x32x256xf32, #tpu.memory_space<vmem>>, vector<4x32x256xf32>
    tpu.vector_store %arg6[%c0_19, %c0_20, %c0_21], %29 {strides = array<i32>} : memref<4x32x256xf32, #tpu.memory_space<vmem>>, vector<4x32x256xf32>,
    return
  }
  func.func @transform_0(%arg0: i32) -> (i32, i32, i32) {
    %c0_i32 = arith.constant 0 : i32
    %c0_i32_0 = arith.constant 0 : i32
    %c0_i32_1 = arith.constant 0 : i32
    return %arg0, %c0_i32, %c0_i32_0 : i32, i32, i32
  }
  func.func @transform_1(%arg0: i32) -> (i32, i32) {
    %c0_i32 = arith.constant 0 : i32
    %c0_i32_0 = arith.constant 0 : i32
    %c0_i32_1 = arith.constant 0 : i32
    return %c0_i32, %c0_i32_0 : i32, i32
  }
  func.func @transform_2(%arg0: i32) -> (i32, i32) {
    %c0_i32 = arith.constant 0 : i32
    %c0_i32_0 = arith.constant 0 : i32
    %c0_i32_1 = arith.constant 0 : i32
    return %c0_i32, %c0_i32_0 : i32, i32
  }
  func.func @transform_3(%arg0: i32) -> (i32, i32) {
    %c0_i32 = arith.constant 0 : i32
    %c0_i32_0 = arith.constant 0 : i32
    %c0_i32_1 = arith.constant 0 : i32
    return %c0_i32, %c0_i32_0 : i32, i32
  }
  func.func @transform_4(%arg0: i32) -> (i32, i32) {
    %c0_i32 = arith.constant 0 : i32
    %c0_i32_0 = arith.constant 0 : i32
    %c0_i32_1 = arith.constant 0 : i32
    return %c0_i32, %c0_i32_0 : i32, i32
  }
  func.func @transform_5(%arg0: i32) -> (i32, i32, i32) {
    %c0_i32 = arith.constant 0 : i32
    %c0_i32_0 = arith.constant 0 : i32
    %c0_i32_1 = arith.constant 0 : i32
    return %arg0, %c0_i32, %c0_i32_0 : i32, i32, i32
  }
}

</mosaic_0001>

<llo_original>
// kernel: tpu_custom_call.1
$region0: #{tpu_custom_call.1}
  #allocation0 [shape = 'u32[]', space=smem, size = 0x4, offset = 0x4, fixed_abs, tag = 'smem constant byte address 0x4 - core index']
  #allocation1 [shape = 'u32[144,128]{1,0:T(1,128)}', space=vmem, size = 0x12000, scoped, tag = 'internal scratch']
  %s0 = inlined_call_operand.hbm [shape: f32[8,32,256], index: 0, kind: input, shape index: {}]
  %s1 = inlined_call_operand.vmem [shape: f32[32,2], index: 1, kind: input, shape index: {}]
  %s2 = inlined_call_operand.vmem [shape: f32[1,2], index: 2, kind: input, shape index: {}]
  %s3 = inlined_call_operand.vmem [shape: f32[2,32], index: 3, kind: input, shape index: {}]
  %s4 = inlined_call_operand.vmem [shape: f32[1,32], index: 4, kind: input, shape index: {}]
  %s5 = inlined_call_operand.hbm [shape: f32[8,32,256], index: 5, kind: output, shape index: {}]
  %s6 = sld [smem:[#allocation0]]
  $region57: #{tpu_custom_call.1} parent=0
    _
  %s8 = ssub.s32 1, %s6
  %s9 = scalar_select 0, %s8, %s6
  $region1: #{tpu_custom_call.1} parent=0
    #allocation2 [shape = 'u8[262144]{0}', space=vmem, size = 0x40000, scoped, tag = 'input window, operand 0']
    #allocation3 [shape = 's32[2]{0}', space=sflag, size = 0x8, scoped, tag = 'scoped memory for tpu_custom_call.1']
    #allocation4 [shape = 's32[2]{0}', space=sflag, size = 0x8, scoped, tag = 'scoped memory for tpu_custom_call.1']
    #allocation5 [shape = 'u8[262144]{0}', space=vmem, size = 0x40000, scoped, tag = 'output window, operand 0']
    %10 = vsyncpa [#allocation3], 0
    %s11 = scalar_lea.sflag [#allocation3], 1
    %12 = vsyncpa %s11, 0
    %13 = vsyncpa [#allocation4], 0
    %s14 = scalar_lea.sflag [#allocation4], 1
    %15 = vsyncpa %s14, 0
    loop: start=0, step=1, limit=4
    $region2: #{tpu_custom_call.1} parent=1 // loop_pre_header
      _
    $region3: #{tpu_custom_call.1} parent=1 // loop_header
      %s17 = sphi 0, %s21
      %p18 = scmp.ge.s32.totalorder %s17, 4
      %s27 = sphi 0, %s29
      %s30 = sphi 0, %s27
      %s31 = sphi 0, %s30
      %s47 = sphi 0, %s31
      %s51 = sphi 0, %s51
      %s53 = sphi 0, %s51
      %s54 = sphi 0, %s53
      %s68 = sphi 0, %s54
      %s72 = sphi 0, %s72
      %s74 = sphi 0, %s72
      %s75 = sphi 0, %s74
      %s89 = sphi 0, %s75
      %s93 = sphi 0, %s93
      %s95 = sphi 0, %s93
      %s96 = sphi 0, %s95
      %s110 = sphi 0, %s96
      %s114 = sphi 0, %s114
      %s116 = sphi 0, %s114
      %s117 = sphi 0, %s116
      %s131 = sphi 0, %s117
      %s137 = sphi 0, %s139
      %s140 = sphi 0, %s137
      %s141 = sphi 0, %s140
      %s157 = sphi 0, %s141
    $region4: #{tpu_custom_call.1} parent=1 // loop_header_branch
      %20 = sbr.rel (%p18) target = $region8
    $region5: #{tpu_custom_call.1} parent=1 // loop_body
      %s22 = ssub.s32 %s17, 1
      %s23 = ssub.s32 %s17, 2
      %s24 = sadd.s32 %s17, 1
      %s25 = ssub.s32 %s17, %s24
      %p26 = scmp.eq.s32.totalorder %s25, 0
      %s28 = sadd.s32 %s27, 1
      %s29 = scalar_select %p26, %s27, %s28
      %p32 = pneg %p26
      %p33 = scmp.eq.s32.totalorder %s17, 1
      %p34 = por %p32, %p33
      %p35 = scmp.ne.s32.totalorder %s27, %s30
      %p36 = scmp.eq.s32.totalorder %s17, 0
      %p37 = por %p35, %p36
      %p38 = scmp.ne.s32.totalorder %s27, %s30
      %p39 = scmp.eq.s32.totalorder %s22, 1
      %p40 = por %p38, %p39
      %p41 = scmp.ne.s32.totalorder %s30, %s31
      %p42 = scmp.eq.s32.totalorder %s22, 0
      %p43 = por %p41, %p42
      %p44 = scmp.ne.s32.totalorder %s30, %s31
      %p45 = scmp.eq.s32.totalorder %s23, 1
      %p46 = por %p44, %p45
      %p48 = scmp.ne.s32.totalorder %s31, %s47
      %p49 = scmp.eq.s32.totalorder %s23, 0
      %p50 = por %p48, %p49
      %s52 = sadd.s32 %s51, 1
      %p55 = scmp.eq.s32.totalorder %s17, 1
      %p56 = scmp.ne.s32.totalorder %s51, %s53
      %p57 = scmp.eq.s32.totalorder %s17, 0
      %p58 = por %p56, %p57
      %p59 = scmp.ne.s32.totalorder %s51, %s53
      %p60 = scmp.eq.s32.totalorder %s22, 1
      %p61 = por %p59, %p60
      %p62 = scmp.ne.s32.totalorder %s53, %s54
      %p63 = scmp.eq.s32.totalorder %s22, 0
      %p64 = por %p62, %p63
      %p65 = scmp.ne.s32.totalorder %s53, %s54
      %p66 = scmp.eq.s32.totalorder %s23, 1
      %p67 = por %p65, %p66
      %p69 = scmp.ne.s32.totalorder %s54, %s68
      %p70 = scmp.eq.s32.totalorder %s23, 0
      %p71 = por %p69, %p70
      %s73 = sadd.s32 %s72, 1
      %p76 = scmp.eq.s32.totalorder %s17, 1
      %p77 = scmp.ne.s32.totalorder %s72, %s74
      %p78 = scmp.eq.s32.totalorder %s17, 0
      %p79 = por %p77, %p78
      %p80 = scmp.ne.s32.totalorder %s72, %s74
      %p81 = scmp.eq.s32.totalorder %s22, 1
      %p82 = por %p80, %p81
      %p83 = scmp.ne.s32.totalorder %s74, %s75
      %p84 = scmp.eq.s32.totalorder %s22, 0
      %p85 = por %p83, %p84
      %p86 = scmp.ne.s32.totalorder %s74, %s75
      %p87 = scmp.eq.s32.totalorder %s23, 1
      %p88 = por %p86, %p87
      %p90 = scmp.ne.s32.totalorder %s75, %s89
      %p91 = scmp.eq.s32.totalorder %s23, 0
      %p92 = por %p90, %p91
      %s94 = sadd.s32 %s93, 1
      %p97 = scmp.eq.s32.totalorder %s17, 1
      %p98 = scmp.ne.s32.totalorder %s93, %s95
      %p99 = scmp.eq.s32.totalorder %s17, 0
      %p100 = por %p98, %p99
      %p101 = scmp.ne.s32.totalorder %s93, %s95
      %p102 = scmp.eq.s32.totalorder %s22, 1
      %p103 = por %p101, %p102
      %p104 = scmp.ne.s32.totalorder %s95, %s96
      %p105 = scmp.eq.s32.totalorder %s22, 0
      %p106 = por %p104, %p105
      %p107 = scmp.ne.s32.totalorder %s95, %s96
      %p108 = scmp.eq.s32.totalorder %s23, 1
      %p109 = por %p107, %p108
      %p111 = scmp.ne.s32.totalorder %s96, %s110
      %p112 = scmp.eq.s32.totalorder %s23, 0
      %p113 = por %p111, %p112
      %s115 = sadd.s32 %s114, 1
      %p118 = scmp.eq.s32.totalorder %s17, 1
      %p119 = scmp.ne.s32.totalorder %s114, %s116
      %p120 = scmp.eq.s32.totalorder %s17, 0
      %p121 = por %p119, %p120
      %p122 = scmp.ne.s32.totalorder %s114, %s116
      %p123 = scmp.eq.s32.totalorder %s22, 1
      %p124 = por %p122, %p123
      %p125 = scmp.ne.s32.totalorder %s116, %s117
      %p126 = scmp.eq.s32.totalorder %s22, 0
      %p127 = por %p125, %p126
      %p128 = scmp.ne.s32.totalorder %s116, %s117
      %p129 = scmp.eq.s32.totalorder %s23, 1
      %p130 = por %p128, %p129
      %p132 = scmp.ne.s32.totalorder %s117, %s131
      %p133 = scmp.eq.s32.totalorder %s23, 0
      %p134 = por %p132, %p133
      %s135 = ssub.s32 %s17, %s24
      %p136 = scmp.eq.s32.totalorder %s135, 0
      %s138 = sadd.s32 %s137, 1
      %s139 = scalar_select %p136, %s137, %s138
      %p142 = pneg %p136
      %p143 = scmp.eq.s32.totalorder %s17, 1
      %p144 = por %p142, %p143
      %p145 = scmp.ne.s32.totalorder %s137, %s140
      %p146 = scmp.eq.s32.totalorder %s17, 0
      %p147 = por %p145, %p146
      %p148 = scmp.ne.s32.totalorder %s137, %s140
      %p149 = scmp.eq.s32.totalorder %s22, 1
      %p150 = por %p148, %p149
      %p151 = scmp.ne.s32.totalorder %s140, %s141
      %p152 = scmp.eq.s32.totalorder %s22, 0
      %p153 = por %p151, %p152
      %p154 = scmp.ne.s32.totalorder %s140, %s141
      %p155 = scmp.eq.s32.totalorder %s23, 1
      %p156 = por %p154, %p155
      %p158 = scmp.ne.s32.totalorder %s141, %s157
      %p159 = scmp.eq.s32.totalorder %s23, 0
      %p160 = por %p158, %p159
      %p161 = scmp.le.s32.totalorder 1, %s17
      %p162 = scmp.lt.s32.totalorder %s17, 3
      %p163 = pnand %p161, %p162
      %p164 = pneg %p163
      // Predicated region
      $region9: #{tpu_custom_call.1} parent=5 // pred_check
        _
      $region10: #{tpu_custom_call.1} parent=5 // pred_check_branch
        %166 = sbr.rel (%p163) target = $region12
      $region11: #{tpu_custom_call.1} parent=5 // pred_region
        %s167 = ssub.s32 %s17, 1
        // Predicated region
        $region13: #{tpu_custom_call.1} parent=11 // pred_check
          %p168 = pneg %p64
        $region14: #{tpu_custom_call.1} parent=11 // pred_check_branch
          %170 = sbr.rel (%p168) target = $region16
        $region15: #{tpu_custom_call.1} parent=11 // pred_region
          _
        $region16: #{tpu_custom_call.1} parent=11 // pred_fallthru
          _
        // Predicated region
        $region17: #{tpu_custom_call.1} parent=11 // pred_check
          %p171 = pneg %p85
        $region18: #{tpu_custom_call.1} parent=11 // pred_check_branch
          %173 = sbr.rel (%p171) target = $region20
        $region19: #{tpu_custom_call.1} parent=11 // pred_region
          _
        $region20: #{tpu_custom_call.1} parent=11 // pred_fallthru
          _
        // Predicated region
        $region21: #{tpu_custom_call.1} parent=11 // pred_check
          %p174 = pneg %p106
        $region22: #{tpu_custom_call.1} parent=11 // pred_check_branch
          %176 = sbr.rel (%p174) target = $region24
        $region23: #{tpu_custom_call.1} parent=11 // pred_region
          _
        $region24: #{tpu_custom_call.1} parent=11 // pred_fallthru
          _
        // Predicated region
        $region25: #{tpu_custom_call.1} parent=11 // pred_check
          %p177 = pneg %p127
        $region26: #{tpu_custom_call.1} parent=11 // pred_check_branch
          %179 = sbr.rel (%p177) target = $region28
        $region27: #{tpu_custom_call.1} parent=11 // pred_region
          _
        $region28: #{tpu_custom_call.1} parent=11 // pred_fallthru
          _
      $region12: #{tpu_custom_call.1} parent=5 // pred_fallthru
        _
      %p180 = scmp.lt.s32.totalorder %s17, 2
      // Predicated region
      $region29: #{tpu_custom_call.1} parent=5 // pred_check
        %p181 = pneg %p180
      $region30: #{tpu_custom_call.1} parent=5 // pred_check_branch
        %183 = sbr.rel (%p181) target = $region32
      $region31: #{tpu_custom_call.1} parent=5 // pred_region
        // Predicated region
        $region33: #{tpu_custom_call.1} parent=31 // pred_check
          %p184 = pneg %p37
        $region34: #{tpu_custom_call.1} parent=31 // pred_check_branch
          %186 = sbr.rel (%p184) target = $region36
        $region35: #{tpu_custom_call.1} parent=31 // pred_region
          %s187 = sand.u32 %s27, 1
          %s188 = scalar_lea.sflag [#allocation3], %s187
          %s189 = sand.u32 %s27, 1
          %s190 = smul.addr %s189, 256
          %s191 = scalar_lea.vmem [#allocation2], %s190
          %s192 = smul.u32 4, %s17
          %s194 = ssub.s32 4096, 4096
          %195 = vsyncadd %s188, %s194
          %s196 = smul.addr %s192, 8
          %s197 = smul.addr %s196, 128
          %s198 = scalar_lea.hbm %s0, %s197
          %s199 = sshll.u32 %s191, 4
          %s200 = int_to_ptr.vmem [resolvable:$true] %s199
          %205 = dma.hbm_to_vmem [thread:$0]  %s198, 4096, %s200, %s188, 256, 256, 16
        $region36: #{tpu_custom_call.1} parent=31 // pred_fallthru
          _
      $region32: #{tpu_custom_call.1} parent=5 // pred_fallthru
        _
      %p206 = scmp.le.s32.totalorder 1, %s17
      %p207 = scmp.lt.s32.totalorder %s17, 3
      %p208 = pnand %p206, %p207
      %p209 = pneg %p208
      // Predicated region
      $region37: #{tpu_custom_call.1} parent=5 // pred_check
        _
      $region38: #{tpu_custom_call.1} parent=5 // pred_check_branch
        %211 = sbr.rel (%p208) target = $region40
      $region39: #{tpu_custom_call.1} parent=5 // pred_region
        %s212 = ssub.s32 %s17, 1
        %s213 = sand.u32 %s30, 1
        %s214 = scalar_lea.sflag [#allocation3], %s213
        %s215 = sand.u32 %s30, 1
        %s216 = smul.addr %s215, 256
        %s217 = scalar_lea.vmem [#allocation2], %s216
        // Predicated region
        $region41: #{tpu_custom_call.1} parent=39 // pred_check
          %p218 = pneg %p43
        $region42: #{tpu_custom_call.1} parent=39 // pred_check_branch
          %220 = sbr.rel (%p218) target = $region44
        $region43: #{tpu_custom_call.1} parent=39 // pred_region
          %221 = dma.done %s214, 4096
        $region44: #{tpu_custom_call.1} parent=39 // pred_fallthru
          _
        %s222 = sand.u32 %s30, 1
        %s223 = scalar_lea.sflag [#allocation3], %s222
        %s224 = sand.u32 %s30, 1
        %s225 = smul.addr %s224, 256
        %s226 = scalar_lea.vmem [#allocation2], %s225
        %p227 = pneg %p43
        %p228 = pneg %p40
        %p229 = pneg %p64
        %p230 = pneg %p61
        %p231 = pneg %p85
        %p232 = pneg %p82
        %p233 = pneg %p106
        %p234 = pneg %p103
        %p235 = pneg %p127
        %p236 = pneg %p124
        %p237 = pneg %p153
        %p238 = pneg %p150
        %s239 = sand.u32 %s140, 1
        %s240 = scalar_lea.sflag [#allocation4], %s239
        %s241 = sand.u32 %s140, 1
        %s242 = smul.addr %s241, 256
        %s243 = scalar_lea.vmem [#allocation5], %s242
        %s244 = smul.u32 4, %s22
        %s245 = smul.u32 4, %s22
        %v246 = vld [vmem:[%s217] sm:$0xff]
        %v247 = vld [vmem:[%s217 + $0x8] sm:$0xff]
        %v248 = vld [vmem:[%s217 + $0x10] sm:$0xff]
        %v249 = vld [vmem:[%s217 + $0x18] sm:$0xff]
        %v250 = vld [vmem:[%s217 + $0x20] sm:$0xff]
        %v251 = vld [vmem:[%s217 + $0x28] sm:$0xff]
        %v252 = vld [vmem:[%s217 + $0x30] sm:$0xff]
        %v253 = vld [vmem:[%s217 + $0x38] sm:$0xff]
        %v254 = vld [vmem:[%s217 + $0x40] sm:$0xff]
        %v255 = vld [vmem:[%s217 + $0x48] sm:$0xff]
        %v256 = vld [vmem:[%s217 + $0x50] sm:$0xff]
        %v257 = vld [vmem:[%s217 + $0x58] sm:$0xff]
        %v258 = vld [vmem:[%s217 + $0x60] sm:$0xff]
        %v259 = vld [vmem:[%s217 + $0x68] sm:$0xff]
        %v260 = vld [vmem:[%s217 + $0x70] sm:$0xff]
        %v261 = vld [vmem:[%s217 + $0x78] sm:$0xff]
        %v262 = vld [vmem:[%s217 + $0x80] sm:$0xff]
        %v263 = vld [vmem:[%s217 + $0x88] sm:$0xff]
        %v264 = vld [vmem:[%s217 + $0x90] sm:$0xff]
        %v265 = vld [vmem:[%s217 + $0x98] sm:$0xff]
        %v266 = vld [vmem:[%s217 + $0xa0] sm:$0xff]
        %v267 = vld [vmem:[%s217 + $0xa8] sm:$0xff]
        %v268 = vld [vmem:[%s217 + $0xb0] sm:$0xff]
        %v269 = vld [vmem:[%s217 + $0xb8] sm:$0xff]
        %v270 = vld [vmem:[%s217 + $0xc0] sm:$0xff]
        %v271 = vld [vmem:[%s217 + $0xc8] sm:$0xff]
        %v272 = vld [vmem:[%s217 + $0xd0] sm:$0xff]
        %v273 = vld [vmem:[%s217 + $0xd8] sm:$0xff]
        %v274 = vld [vmem:[%s217 + $0xe0] sm:$0xff]
        %v275 = vld [vmem:[%s217 + $0xe8] sm:$0xff]
        %v276 = vld [vmem:[%s217 + $0xf0] sm:$0xff]
        %v277 = vld [vmem:[%s217 + $0xf8] sm:$0xff]
        %v278 = vadd.f32 %v246, %v247
        %279 = vadd.xlane.f32.xlu0 %v278
        %v280 = vpop.xlane.xlu0 %279
        %v281 = vadd.f32 %v248, %v249
        %282 = vadd.xlane.f32.xlu0 %v281
        %v283 = vpop.xlane.xlu0 %282
        %v284 = vadd.f32 %v250, %v251
        %285 = vadd.xlane.f32.xlu0 %v284
        %v286 = vpop.xlane.xlu0 %285
        %v287 = vadd.f32 %v252, %v253
        %288 = vadd.xlane.f32.xlu0 %v287
        %v289 = vpop.xlane.xlu0 %288
        %v290 = vadd.f32 %v254, %v255
        %291 = vadd.xlane.f32.xlu0 %v290
        %v292 = vpop.xlane.xlu0 %291
        %v293 = vadd.f32 %v256, %v257
        %294 = vadd.xlane.f32.xlu0 %v293
        %v295 = vpop.xlane.xlu0 %294
        %v296 = vadd.f32 %v258, %v259
        %297 = vadd.xlane.f32.xlu0 %v296
        %v298 = vpop.xlane.xlu0 %297
        %v299 = vadd.f32 %v260, %v261
        %300 = vadd.xlane.f32.xlu0 %v299
        %v301 = vpop.xlane.xlu0 %300
        %v302 = vadd.f32 %v262, %v263
        %303 = vadd.xlane.f32.xlu0 %v302
        %v304 = vpop.xlane.xlu0 %303
        %v305 = vadd.f32 %v264, %v265
        %306 = vadd.xlane.f32.xlu0 %v305
        %v307 = vpop.xlane.xlu0 %306
        %v308 = vadd.f32 %v266, %v267
        %309 = vadd.xlane.f32.xlu0 %v308
        %v310 = vpop.xlane.xlu0 %309
        %v311 = vadd.f32 %v268, %v269
        %312 = vadd.xlane.f32.xlu0 %v311
        %v313 = vpop.xlane.xlu0 %312
        %v314 = vadd.f32 %v270, %v271
        %315 = vadd.xlane.f32.xlu0 %v314
        %v316 = vpop.xlane.xlu0 %315
        %v317 = vadd.f32 %v272, %v273
        %318 = vadd.xlane.f32.xlu0 %v317
        %v319 = vpop.xlane.xlu0 %318
        %v320 = vadd.f32 %v274, %v275
        %321 = vadd.xlane.f32.xlu0 %v320
        %v322 = vpop.xlane.xlu0 %321
        %v323 = vadd.f32 %v276, %v277
        %324 = vadd.xlane.f32.xlu0 %v323
        %v325 = vpop.xlane.xlu0 %324
        %v326 = vmax.f32 %v246, %v247
        %327 = vmax.xlane.f32.xlu0 %v326
        %v328 = vpop.xlane.xlu0 %327
        %v329 = vmax.f32 %v248, %v249
        %330 = vmax.xlane.f32.xlu0 %v329
        %v331 = vpop.xlane.xlu0 %330
        %v332 = vmax.f32 %v250, %v251
        %333 = vmax.xlane.f32.xlu0 %v332
        %v334 = vpop.xlane.xlu0 %333
        %v335 = vmax.f32 %v252, %v253
        %336 = vmax.xlane.f32.xlu0 %v335
        %v337 = vpop.xlane.xlu0 %336
        %v338 = vmax.f32 %v254, %v255
        %339 = vmax.xlane.f32.xlu0 %v338
        %v340 = vpop.xlane.xlu0 %339
        %v341 = vmax.f32 %v256, %v257
        %342 = vmax.xlane.f32.xlu0 %v341
        %v343 = vpop.xlane.xlu0 %342
        %v344 = vmax.f32 %v258, %v259
        %345 = vmax.xlane.f32.xlu0 %v344
        %v346 = vpop.xlane.xlu0 %345
        %v347 = vmax.f32 %v260, %v261
        %348 = vmax.xlane.f32.xlu0 %v347
        %v349 = vpop.xlane.xlu0 %348
        %v350 = vmax.f32 %v262, %v263
        %351 = vmax.xlane.f32.xlu0 %v350
        %v352 = vpop.xlane.xlu0 %351
        %v353 = vmax.f32 %v264, %v265
        %354 = vmax.xlane.f32.xlu0 %v353
        %v355 = vpop.xlane.xlu0 %354
        %v356 = vmax.f32 %v266, %v267
        %357 = vmax.xlane.f32.xlu0 %v356
        %v358 = vpop.xlane.xlu0 %357
        %v359 = vmax.f32 %v268, %v269
        %360 = vmax.xlane.f32.xlu0 %v359
        %v361 = vpop.xlane.xlu0 %360
        %v362 = vmax.f32 %v270, %v271
        %363 = vmax.xlane.f32.xlu0 %v362
        %v364 = vpop.xlane.xlu0 %363
        %v365 = vmax.f32 %v272, %v273
        %366 = vmax.xlane.f32.xlu0 %v365
        %v367 = vpop.xlane.xlu0 %366
        %v368 = vmax.f32 %v274, %v275
        %369 = vmax.xlane.f32.xlu0 %v368
        %v370 = vpop.xlane.xlu0 %369
        %v371 = vmax.f32 %v276, %v277
        %372 = vmax.xlane.f32.xlu0 %v371
        %v373 = vpop.xlane.xlu0 %372
        %v374 = vmul.f32 %v280, 0.00390625
        %v375 = vmul.f32 %v283, 0.00390625
        %v376 = vmul.f32 %v286, 0.00390625
        %v377 = vmul.f32 %v289, 0.00390625
        %v378 = vmul.f32 %v292, 0.00390625
        %v379 = vmul.f32 %v295, 0.00390625
        %v380 = vmul.f32 %v298, 0.00390625
        %v381 = vmul.f32 %v301, 0.00390625
        %v382 = vmul.f32 %v304, 0.00390625
        %v383 = vmul.f32 %v307, 0.00390625
        %v384 = vmul.f32 %v310, 0.00390625
        %v385 = vmul.f32 %v313, 0.00390625
        %v386 = vmul.f32 %v316, 0.00390625
        %v387 = vmul.f32 %v319, 0.00390625
        %v388 = vmul.f32 %v322, 0.00390625
        %v389 = vmul.f32 %v325, 0.00390625
        %v406 = vlaneseq
        %v407 = vand.u32 %v406, 127
        %v408 = vlaneseq
        %v409 = vshrl.u32 %v408, 7
        %v410 = vsub.s32 %v407, %v409
        %v411 = vrot.slane %v374, %v410
        %v412 = vadd.s32 %v407, 4294967288
        %v413 = vlaneseq
        %v414 = vshrl.u32 %v413, 7
        %v415 = vsub.s32 %v412, %v414
        %v416 = vrot.slane %v375, %v415
        %vm417 = vcmask 130112
        %v418 = vsel %vm417, %v416, %v411
        %v419 = vadd.s32 %v407, 4294967280
        %v420 = vlaneseq
        %v421 = vshrl.u32 %v420, 7
        %v422 = vsub.s32 %v419, %v421
        %v423 = vrot.slane %v376, %v422
        %vm424 = vcmask 195712
        %v425 = vsel %vm424, %v423, %v418
        %v426 = vadd.s32 %v407, 4294967272
        %v427 = vlaneseq
        %v428 = vshrl.u32 %v427, 7
        %v429 = vsub.s32 %v426, %v428
        %v430 = vrot.slane %v377, %v429
        %vm431 = vcmask 261312
        %v432 = vsel %vm431, %v430, %v425
        %v433 = vlaneseq
        %v434 = vshrl.u32 %v433, 7
        %v435 = vsub.s32 %v407, %v434
        %v436 = vrot.slane %v378, %v435
        %v437 = vlaneseq
        %v438 = vshrl.u32 %v437, 7
        %v439 = vsub.s32 %v412, %v438
        %v440 = vrot.slane %v379, %v439
        %v441 = vsel %vm417, %v440, %v436
        %v442 = vlaneseq
        %v443 = vshrl.u32 %v442, 7
        %v444 = vsub.s32 %v419, %v443
        %v445 = vrot.slane %v380, %v444
        %v446 = vsel %vm424, %v445, %v441
        %v447 = vlaneseq
        %v448 = vshrl.u32 %v447, 7
        %v449 = vsub.s32 %v426, %v448
        %v450 = vrot.slane %v381, %v449
        %v451 = vsel %vm431, %v450, %v446
        %v452 = vlaneseq
        %v453 = vshrl.u32 %v452, 7
        %v454 = vsub.s32 %v407, %v453
        %v455 = vrot.slane %v382, %v454
        %v456 = vlaneseq
        %v457 = vshrl.u32 %v456, 7
        %v458 = vsub.s32 %v412, %v457
        %v459 = vrot.slane %v383, %v458
        %v460 = vsel %vm417, %v459, %v455
        %v461 = vlaneseq
        %v462 = vshrl.u32 %v461, 7
        %v463 = vsub.s32 %v419, %v462
        %v464 = vrot.slane %v384, %v463
        %v465 = vsel %vm424, %v464, %v460
        %v466 = vlaneseq
        %v467 = vshrl.u32 %v466, 7
        %v468 = vsub.s32 %v426, %v467
        %v469 = vrot.slane %v385, %v468
        %v470 = vsel %vm431, %v469, %v465
        %v471 = vlaneseq
        %v472 = vshrl.u32 %v471, 7
        %v473 = vsub.s32 %v407, %v472
        %v474 = vrot.slane %v386, %v473
        %v475 = vlaneseq
        %v476 = vshrl.u32 %v475, 7
        %v477 = vsub.s32 %v412, %v476
        %v478 = vrot.slane %v387, %v477
        %v479 = vsel %vm417, %v478, %v474
        %v480 = vlaneseq
        %v481 = vshrl.u32 %v480, 7
        %v482 = vsub.s32 %v419, %v481
        %v483 = vrot.slane %v388, %v482
        %v484 = vsel %vm424, %v483, %v479
        %v485 = vlaneseq
        %v486 = vshrl.u32 %v485, 7
        %v487 = vsub.s32 %v426, %v486
        %v488 = vrot.slane %v389, %v487
        %v489 = vsel %vm431, %v488, %v484
        %vm490 = vcmask 1041409
        %v491 = vsel %vm490, %v451, %v432
        %vm492 = vcmask 1042434
        %v493 = vsel %vm492, %v470, %v491
        %vm494 = vcmask 1043459
        %v495 = vsel %vm494, %v489, %v493
        %v513 = vlaneseq
        %v514 = vshrl.u32 %v513, 7
        %v515 = vsub.s32 %v407, %v514
        %v516 = vrot.slane %v328, %v515
        %v517 = vlaneseq
        %v518 = vshrl.u32 %v517, 7
        %v519 = vsub.s32 %v412, %v518
        %v520 = vrot.slane %v331, %v519
        %v521 = vsel %vm417, %v520, %v516
        %v522 = vlaneseq
        %v523 = vshrl.u32 %v522, 7
        %v524 = vsub.s32 %v419, %v523
        %v525 = vrot.slane %v334, %v524
        %v526 = vsel %vm424, %v525, %v521
        %v527 = vlaneseq
        %v528 = vshrl.u32 %v527, 7
        %v529 = vsub.s32 %v426, %v528
        %v530 = vrot.slane %v337, %v529
        %v531 = vsel %vm431, %v530, %v526
        %v532 = vlaneseq
        %v533 = vshrl.u32 %v532, 7
        %v534 = vsub.s32 %v407, %v533
        %v535 = vrot.slane %v340, %v534
        %v536 = vlaneseq
        %v537 = vshrl.u32 %v536, 7
        %v538 = vsub.s32 %v412, %v537
        %v539 = vrot.slane %v343, %v538
        %v540 = vsel %vm417, %v539, %v535
        %v541 = vlaneseq
        %v542 = vshrl.u32 %v541, 7
        %v543 = vsub.s32 %v419, %v542
        %v544 = vrot.slane %v346, %v543
        %v545 = vsel %vm424, %v544, %v540
        %v546 = vlaneseq
        %v547 = vshrl.u32 %v546, 7
        %v548 = vsub.s32 %v426, %v547
        %v549 = vrot.slane %v349, %v548
        %v550 = vsel %vm431, %v549, %v545
        %v551 = vlaneseq
        %v552 = vshrl.u32 %v551, 7
        %v553 = vsub.s32 %v407, %v552
        %v554 = vrot.slane %v352, %v553
        %v555 = vlaneseq
        %v556 = vshrl.u32 %v555, 7
        %v557 = vsub.s32 %v412, %v556
        %v558 = vrot.slane %v355, %v557
        %v559 = vsel %vm417, %v558, %v554
        %v560 = vlaneseq
        %v561 = vshrl.u32 %v560, 7
        %v562 = vsub.s32 %v419, %v561
        %v563 = vrot.slane %v358, %v562
        %v564 = vsel %vm424, %v563, %v559
        %v565 = vlaneseq
        %v566 = vshrl.u32 %v565, 7
        %v567 = vsub.s32 %v426, %v566
        %v568 = vrot.slane %v361, %v567
        %v569 = vsel %vm431, %v568, %v564
        %v570 = vlaneseq
        %v571 = vshrl.u32 %v570, 7
        %v572 = vsub.s32 %v407, %v571
        %v573 = vrot.slane %v364, %v572
        %v574 = vlaneseq
        %v575 = vshrl.u32 %v574, 7
        %v576 = vsub.s32 %v412, %v575
        %v577 = vrot.slane %v367, %v576
        %v578 = vsel %vm417, %v577, %v573
        %v579 = vlaneseq
        %v580 = vshrl.u32 %v579, 7
        %v581 = vsub.s32 %v419, %v580
        %v582 = vrot.slane %v370, %v581
        %v583 = vsel %vm424, %v582, %v578
        %v584 = vlaneseq
        %v585 = vshrl.u32 %v584, 7
        %v586 = vsub.s32 %v426, %v585
        %v587 = vrot.slane %v373, %v586
        %v588 = vsel %vm431, %v587, %v583
        %vm589 = vcmask 1045509
        %v590 = vsel %vm589, %v550, %v531
        %vm591 = vcmask 1046534
        %v592 = vsel %vm591, %v569, %v590
        %vm593 = vcmask 1047559
        %v594 = vsel %vm593, %v588, %v592
        %vm596 = vcmask 1043456
        %v597 = vsel %vm596, %v495, %v594
        %v598 = vld [vmem:[%s1] sm:$0xff]
        %v599 = vld [vmem:[%s1 + $0x8] sm:$0xff]
        %v600 = vld [vmem:[%s1 + $0x10] sm:$0xff]
        %v601 = vld [vmem:[%s1 + $0x18] sm:$0xff]
        %v602 = vld [vmem:[%s2] sm:$0x1]
        %v604 = vlaneseq
        %v605 = vshrl.u32 %v604, 7
        %v606 = vsub.s32 0, %v605
        %v607 = vrot.slane %v602, %v606
        %vm609 = vcmask 261120
        %v611 = vsel %vm609, %v597, 0
        %613 = vmatprep.subr.mxu0 0.0
        %614 = vmatpush1.msra.mxu0 %v598
        %615 = vmatprep.subr.mxu0 0.0
        %616 = vmatpush1.msra.mxu0 %v599
        %617 = vmatprep.subr.mxu0 0.0
        %618 = vmatpush1.msra.mxu0 %v600
        %619 = vmatprep.subr.mxu0 0.0
        %620 = vmatpush1.msra.mxu0 %v601
        %621 = vmatprep.subr.mxu0 0.0
        %622 = vmatpush1.msra.mxu0 0.0
        %623 = vmatprep.subr.mxu0 0.0
        %624 = vmatpush1.msra.mxu0 0.0
        %625 = vmatprep.subr.mxu0 0.0
        %626 = vmatpush1.msra.mxu0 0.0
        %627 = vmatprep.subr.mxu0 0.0
        %628 = vmatpush1.msra.mxu0 0.0
        %629 = vmatprep.subr.mxu0 0.0
        %630 = vmatpush1.msra.mxu0 0.0
        %631 = vmatprep.subr.mxu0 0.0
        %632 = vmatpush1.msra.mxu0 0.0
        %633 = vmatprep.subr.mxu0 0.0
        %634 = vmatpush1.msra.mxu0 0.0
        %635 = vmatprep.subr.mxu0 0.0
        %636 = vmatpush1.msra.mxu0 0.0
        %637 = vmatprep.subr.mxu0 0.0
        %638 = vmatpush1.msra.mxu0 0.0
        %639 = vmatprep.subr.mxu0 0.0
        %640 = vmatpush1.msra.mxu0 0.0
        %641 = vmatprep.subr.mxu0 0.0
        %642 = vmatpush1.msra.mxu0 0.0
        %643 = vmatprep.subr.mxu0 0.0
        %644 = vmatpush1.msra.mxu0 0.0
        %645 = vmatprep.subr.mxu0 0.0
        %646 = vmatpush1.msra.mxu0 0.0
        %647 = vmatprep.subr.mxu0 0.0
        %648 = vmatpush1.msra.mxu0 0.0
        %649 = vmatprep.subr.mxu0 0.0
        %650 = vmatpush1.msra.mxu0 0.0
        %651 = vmatprep.subr.mxu0 0.0
        %652 = vmatpush1.msra.mxu0 0.0
        %653 = vmatprep.subr.mxu0 0.0
        %654 = vmatpush1.msra.mxu0 0.0
        %655 = vmatprep.subr.mxu0 0.0
        %656 = vmatpush1.msra.mxu0 0.0
        %657 = vmatprep.subr.mxu0 0.0
        %658 = vmatpush1.msra.mxu0 0.0
        %659 = vmatprep.subr.mxu0 0.0
        %660 = vmatpush1.msra.mxu0 0.0
        %661 = vmatprep.subr.mxu0 0.0
        %662 = vmatpush1.msra.mxu0 0.0
        %663 = vmatprep.subr.mxu0 0.0
        %664 = vmatpush1.msra.mxu0 0.0
        %665 = vmatprep.subr.mxu0 0.0
        %666 = vmatpush1.msra.mxu0 0.0
        %667 = vmatprep.subr.mxu0 0.0
        %668 = vmatpush1.msra.mxu0 0.0
        %669 = vmatprep.subr.mxu0 0.0
        %670 = vmatpush1.msra.mxu0 0.0
        %671 = vmatprep.subr.mxu0 0.0
        %672 = vmatpush1.msra.mxu0 0.0
        %673 = vmatprep.subr.mxu0 0.0
        %674 = vmatpush1.msra.mxu0 0.0
        %675 = vmatprep.subr.mxu0 0.0
        %676 = vmatpush1.msra.mxu0 0.0
        %677 = vmatprep.mubr.f32.mxu0 0.0
        %678 = vmatmul.mubr.f32.gmra.mrb[0].mxu0 %v611
        %v679 = vpop.f32.mrb[0].mxu0
        %v680 = vadd.f32 %v607, %v679
        %v681 = vpop.f32.mrb[0].mxu0
        %682 = vdwg.mxu0
        %v683 = vmax.f32 %v680, 0.0
        %v684 = vld [vmem:[%s3] sm:$0x3]
        %v685 = vld [vmem:[%s4] sm:$0x1]
        %v687 = vlaneseq
        %v688 = vshrl.u32 %v687, 7
        %v689 = vsub.s32 0, %v688
        %v690 = vrot.slane %v685, %v689
        %vm692 = vcmask 15360
        %v694 = vsel %vm692, %v683, 0
        %vm696 = vcmask 1041408
        %v698 = vsel %vm696, %v684, 0
        %700 = vmatprep.subr.mxu0 0.0
        %701 = vmatpush1.msra.mxu0 %v698
        %702 = vmatprep.subr.mxu0 0.0
        %703 = vmatpush1.msra.mxu0 0.0
        %704 = vmatprep.subr.mxu0 0.0
        %705 = vmatpush1.msra.mxu0 0.0
        %706 = vmatprep.subr.mxu0 0.0
        %707 = vmatpush1.msra.mxu0 0.0
        %708 = vmatprep.subr.mxu0 0.0
        %709 = vmatpush1.msra.mxu0 0.0
        %710 = vmatprep.subr.mxu0 0.0
        %711 = vmatpush1.msra.mxu0 0.0
        %712 = vmatprep.subr.mxu0 0.0
        %713 = vmatpush1.msra.mxu0 0.0
        %714 = vmatprep.subr.mxu0 0.0
        %715 = vmatpush1.msra.mxu0 0.0
        %716 = vmatprep.subr.mxu0 0.0
        %717 = vmatpush1.msra.mxu0 0.0
        %718 = vmatprep.subr.mxu0 0.0
        %719 = vmatpush1.msra.mxu0 0.0
        %720 = vmatprep.subr.mxu0 0.0
        %721 = vmatpush1.msra.mxu0 0.0
        %722 = vmatprep.subr.mxu0 0.0
        %723 = vmatpush1.msra.mxu0 0.0
        %724 = vmatprep.subr.mxu0 0.0
        %725 = vmatpush1.msra.mxu0 0.0
        %726 = vmatprep.subr.mxu0 0.0
        %727 = vmatpush1.msra.mxu0 0.0
        %728 = vmatprep.subr.mxu0 0.0
        %729 = vmatpush1.msra.mxu0 0.0
        %730 = vmatprep.subr.mxu0 0.0
        %731 = vmatpush1.msra.mxu0 0.0
        %732 = vmatprep.subr.mxu0 0.0
        %733 = vmatpush1.msra.mxu0 0.0
        %734 = vmatprep.subr.mxu0 0.0
        %735 = vmatpush1.msra.mxu0 0.0
        %736 = vmatprep.subr.mxu0 0.0
        %737 = vmatpush1.msra.mxu0 0.0
        %738 = vmatprep.subr.mxu0 0.0
        %739 = vmatpush1.msra.mxu0 0.0
        %740 = vmatprep.subr.mxu0 0.0
        %741 = vmatpush1.msra.mxu0 0.0
        %742 = vmatprep.subr.mxu0 0.0
        %743 = vmatpush1.msra.mxu0 0.0
        %744 = vmatprep.subr.mxu0 0.0
        %745 = vmatpush1.msra.mxu0 0.0
        %746 = vmatprep.subr.mxu0 0.0
        %747 = vmatpush1.msra.mxu0 0.0
        %748 = vmatprep.subr.mxu0 0.0
        %749 = vmatpush1.msra.mxu0 0.0
        %750 = vmatprep.subr.mxu0 0.0
        %751 = vmatpush1.msra.mxu0 0.0
        %752 = vmatprep.subr.mxu0 0.0
        %753 = vmatpush1.msra.mxu0 0.0
        %754 = vmatprep.subr.mxu0 0.0
        %755 = vmatpush1.msra.mxu0 0.0
        %756 = vmatprep.subr.mxu0 0.0
        %757 = vmatpush1.msra.mxu0 0.0
        %758 = vmatprep.subr.mxu0 0.0
        %759 = vmatpush1.msra.mxu0 0.0
        %760 = vmatprep.subr.mxu0 0.0
        %761 = vmatpush1.msra.mxu0 0.0
        %762 = vmatprep.subr.mxu0 0.0
        %763 = vmatpush1.msra.mxu0 0.0
        %764 = vmatprep.mubr.f32.mxu0 0.0
        %765 = vmatmul.mubr.f32.gmra.mrb[0].mxu0 %v694
        %v766 = vpop.f32.mrb[0].mxu0
        %v767 = vadd.f32 %v690, %v766
        %v768 = vpop.f32.mrb[0].mxu0
        %769 = vdwg.mxu0
        %v771 = vrot.slane %v767, 4
        %v773 = vadd.f32 %v767, %v771
        %v774 = vxor.u32 %v773, 2147483648
        %v775 = vmul.f32 %v774, 1.442695
        %v776 = vpow.pop %v775
        %v777 = vadd.f32 %v776, 1.0
        %v778 = vrcp.pop %v777
        %v779 = vmul.f32 1.0, %v778
        %v780 = vlaneseq
        %v781 = vshrl.u32 %v780, 7
        %v782 = vsub.s32 0, %v781
        %v783 = vrot.slane %v779, %v782
        %785 = vbcast.lane.b32.xlu0 %v783, 256
        %v786 = vpop.permute.xlu0 %785
        %s788 = sor.u32 256, 8
        %789 = vbcast.lane.b32.xlu0 %v783, %s788
        %v790 = vpop.permute.xlu0 %789
        %s792 = sor.u32 256, 16
        %793 = vbcast.lane.b32.xlu0 %v783, %s792
        %v794 = vpop.permute.xlu0 %793
        %s796 = sor.u32 256, 24
        %797 = vbcast.lane.b32.xlu0 %v783, %s796
        %v798 = vpop.permute.xlu0 %797
        %v799 = vlaneseq
        %v800 = vshrl.u32 %v799, 7
        %v801 = vsub.s32 1, %v800
        %v802 = vrot.slane %v779, %v801
        %804 = vbcast.lane.b32.xlu0 %v802, 256
        %v805 = vpop.permute.xlu0 %804
        %s807 = sor.u32 256, 8
        %808 = vbcast.lane.b32.xlu0 %v802, %s807
        %v809 = vpop.permute.xlu0 %808
        %s811 = sor.u32 256, 16
        %812 = vbcast.lane.b32.xlu0 %v802, %s811
        %v813 = vpop.permute.xlu0 %812
        %s815 = sor.u32 256, 24
        %816 = vbcast.lane.b32.xlu0 %v802, %s815
        %v817 = vpop.permute.xlu0 %816
        %v818 = vlaneseq
        %v819 = vshrl.u32 %v818, 7
        %v820 = vsub.s32 2, %v819
        %v821 = vrot.slane %v779, %v820
        %823 = vbcast.lane.b32.xlu0 %v821, 256
        %v824 = vpop.permute.xlu0 %823
        %s826 = sor.u32 256, 8
        %827 = vbcast.lane.b32.xlu0 %v821, %s826
        %v828 = vpop.permute.xlu0 %827
        %s830 = sor.u32 256, 16
        %831 = vbcast.lane.b32.xlu0 %v821, %s830
        %v832 = vpop.permute.xlu0 %831
        %s834 = sor.u32 256, 24
        %835 = vbcast.lane.b32.xlu0 %v821, %s834
        %v836 = vpop.permute.xlu0 %835
        %v837 = vlaneseq
        %v838 = vshrl.u32 %v837, 7
        %v839 = vsub.s32 3, %v838
        %v840 = vrot.slane %v779, %v839
        %842 = vbcast.lane.b32.xlu0 %v840, 256
        %v843 = vpop.permute.xlu0 %842
        %s845 = sor.u32 256, 8
        %846 = vbcast.lane.b32.xlu0 %v840, %s845
        %v847 = vpop.permute.xlu0 %846
        %s849 = sor.u32 256, 16
        %850 = vbcast.lane.b32.xlu0 %v840, %s849
        %v851 = vpop.permute.xlu0 %850
        %s853 = sor.u32 256, 24
        %854 = vbcast.lane.b32.xlu0 %v840, %s853
        %v855 = vpop.permute.xlu0 %854
        %v856 = vmul.f32 %v246, %v786
        %v857 = vmul.f32 %v247, %v786
        %v858 = vmul.f32 %v248, %v790
        %v859 = vmul.f32 %v249, %v790
        %v860 = vmul.f32 %v250, %v794
        %v861 = vmul.f32 %v251, %v794
        %v862 = vmul.f32 %v252, %v798
        %v863 = vmul.f32 %v253, %v798
        %v864 = vmul.f32 %v254, %v805
        %v865 = vmul.f32 %v255, %v805
        %v866 = vmul.f32 %v256, %v809
        %v867 = vmul.f32 %v257, %v809
        %v868 = vmul.f32 %v258, %v813
        %v869 = vmul.f32 %v259, %v813
        %v870 = vmul.f32 %v260, %v817
        %v871 = vmul.f32 %v261, %v817
        %v872 = vmul.f32 %v262, %v824
        %v873 = vmul.f32 %v263, %v824
        %v874 = vmul.f32 %v264, %v828
        %v875 = vmul.f32 %v265, %v828
        %v876 = vmul.f32 %v266, %v832
        %v877 = vmul.f32 %v267, %v832
        %v878 = vmul.f32 %v268, %v836
        %v879 = vmul.f32 %v269, %v836
        %v880 = vmul.f32 %v270, %v843
        %v881 = vmul.f32 %v271, %v843
        %v882 = vmul.f32 %v272, %v847
        %v883 = vmul.f32 %v273, %v847
        %v884 = vmul.f32 %v274, %v851
        %v885 = vmul.f32 %v275, %v851
        %v886 = vmul.f32 %v276, %v855
        %v887 = vmul.f32 %v277, %v855
        %888 = vst [vmem:[%s243] sm:$0xff] %v856
        %889 = vst [vmem:[%s243 + $0x8] sm:$0xff] %v857
        %890 = vst [vmem:[%s243 + $0x10] sm:$0xff] %v858
        %891 = vst [vmem:[%s243 + $0x18] sm:$0xff] %v859
        %892 = vst [vmem:[%s243 + $0x20] sm:$0xff] %v860
        %893 = vst [vmem:[%s243 + $0x28] sm:$0xff] %v861
        %894 = vst [vmem:[%s243 + $0x30] sm:$0xff] %v862
        %895 = vst [vmem:[%s243 + $0x38] sm:$0xff] %v863
        %896 = vst [vmem:[%s243 + $0x40] sm:$0xff] %v864
        %897 = vst [vmem:[%s243 + $0x48] sm:$0xff] %v865
        %898 = vst [vmem:[%s243 + $0x50] sm:$0xff] %v866
        %899 = vst [vmem:[%s243 + $0x58] sm:$0xff] %v867
        %900 = vst [vmem:[%s243 + $0x60] sm:$0xff] %v868
        %901 = vst [vmem:[%s243 + $0x68] sm:$0xff] %v869
        %902 = vst [vmem:[%s243 + $0x70] sm:$0xff] %v870
        %903 = vst [vmem:[%s243 + $0x78] sm:$0xff] %v871
        %904 = vst [vmem:[%s243 + $0x80] sm:$0xff] %v872
        %905 = vst [vmem:[%s243 + $0x88] sm:$0xff] %v873
        %906 = vst [vmem:[%s243 + $0x90] sm:$0xff] %v874
        %907 = vst [vmem:[%s243 + $0x98] sm:$0xff] %v875
        %908 = vst [vmem:[%s243 + $0xa0] sm:$0xff] %v876
        %909 = vst [vmem:[%s243 + $0xa8] sm:$0xff] %v877
        %910 = vst [vmem:[%s243 + $0xb0] sm:$0xff] %v878
        %911 = vst [vmem:[%s243 + $0xb8] sm:$0xff] %v879
        %912 = vst [vmem:[%s243 + $0xc0] sm:$0xff] %v880
        %913 = vst [vmem:[%s243 + $0xc8] sm:$0xff] %v881
        %914 = vst [vmem:[%s243 + $0xd0] sm:$0xff] %v882
        %915 = vst [vmem:[%s243 + $0xd8] sm:$0xff] %v883
        %916 = vst [vmem:[%s243 + $0xe0] sm:$0xff] %v884
        %917 = vst [vmem:[%s243 + $0xe8] sm:$0xff] %v885
        %918 = vst [vmem:[%s243 + $0xf0] sm:$0xff] %v886
        %919 = vst [vmem:[%s243 + $0xf8] sm:$0xff] %v887
        %s920 = sand.u32 %s140, 1
        %s921 = scalar_lea.sflag [#allocation4], %s920
        %s922 = sand.u32 %s140, 1
        %s923 = smul.addr %s922, 256
        %s924 = scalar_lea.vmem [#allocation5], %s923
        // Predicated region
        $region45: #{tpu_custom_call.1} parent=39 // pred_check
          %p925 = pneg %p150
        $region46: #{tpu_custom_call.1} parent=39 // pred_check_branch
          %927 = sbr.rel (%p925) target = $region48
        $region47: #{tpu_custom_call.1} parent=39 // pred_region
          %s928 = smul.u32 4, %s22
          %s930 = ssub.s32 4096, 4096
          %931 = vsyncadd %s921, %s930
          %s932 = smul.addr %s928, 8
          %s933 = smul.addr %s932, 128
          %s934 = scalar_lea.hbm %s5, %s933
          %s935 = sshll.u32 %s924, 4
          %s936 = int_to_ptr.vmem [resolvable:$true] %s935
          %941 = dma.vmem_to_hbm [thread:$0]  %s936, 4096, %s934, %s921, 256, 256, 16
        $region48: #{tpu_custom_call.1} parent=39 // pred_fallthru
          _
      $region40: #{tpu_custom_call.1} parent=5 // pred_fallthru
        _
      %p942 = scmp.le.s32.totalorder 2, %s17
      // Predicated region
      $region49: #{tpu_custom_call.1} parent=5 // pred_check
        %p943 = pneg %p942
      $region50: #{tpu_custom_call.1} parent=5 // pred_check_branch
        %945 = sbr.rel (%p943) target = $region52
      $region51: #{tpu_custom_call.1} parent=5 // pred_region
        %s946 = ssub.s32 %s17, 2
        // Predicated region
        $region53: #{tpu_custom_call.1} parent=51 // pred_check
          %p947 = pneg %p156
        $region54: #{tpu_custom_call.1} parent=51 // pred_check_branch
          %949 = sbr.rel (%p947) target = $region56
        $region55: #{tpu_custom_call.1} parent=51 // pred_region
          %s950 = sand.u32 %s141, 1
          %s951 = scalar_lea.sflag [#allocation4], %s950
          %s952 = sand.u32 %s141, 1
          %s953 = smul.addr %s952, 256
          %s954 = scalar_lea.vmem [#allocation5], %s953
          %955 = dma.done %s951, 4096
        $region56: #{tpu_custom_call.1} parent=51 // pred_fallthru
          _
      $region52: #{tpu_custom_call.1} parent=5 // pred_fallthru
        _
    $region6: #{tpu_custom_call.1} parent=1 // loop_footer
      %s21 = sadd.s32 1, %s17
    $region7: #{tpu_custom_call.1} parent=1 // loop_footer_branch
      %16 = sbr.rel target = $region3
    $region8: #{tpu_custom_call.1} parent=1 // loop_exit
      _
    %956 = vsyncpa [#allocation3], 1
    %s957 = scalar_lea.sflag [#allocation3], 1
    %958 = vsyncpa %s957, 1
    %959 = vsyncpa [#allocation4], 1
    %s960 = scalar_lea.sflag [#allocation4], 1
    %961 = vsyncpa %s960, 1

</llo_original>
